<compile_context>
chip_gen: v6e
topology: v6e:2x2x1
jax: 0.10.0
libtpu: 0.0.40
codegen_flags: <defaults>
</compile_context>

<pallas_src>
import functools

import jax
import jax.numpy as jnp
from jax import lax
from jax.experimental import pallas as pl
from jax.experimental.pallas import tpu as pltpu


_LANE = 128
_SUBLANE = 8
_NEG_BIG = float(jnp.finfo(jnp.float32).min)

_FULL_C_MAX = 8192            # largest class dim handled as a single tile
_WIDE_BLOCK_COLS = 4096       # class-block width for huge vocabularies
_MAX_BLOCK_ELEMS = 1 << 20    # ~4 MiB of f32 per full-tile intermediate
_MAX_BLOCK_ROWS = 512
_VMEM_LIMIT = 40 * 1024 * 1024  # well under v7x's 64 MiB per-TC VMEM


def _cdiv(a, b):
    return (a + b - 1) // b


def _store_block_nll_sum(out_ref, nll, ri, *, block_rows, n_rows, mask_rows):
    """Reduce a (block_rows, 1) NLL column into a lane-dense (8,128) block."""
    if mask_rows:  # static: only when the last row block is ragged
        row_ids = ri * block_rows + lax.broadcasted_iota(
            jnp.int32, (block_rows, 1), 0)
        nll = jnp.where(row_ids < n_rows, nll, 0.0)
    total = jnp.sum(nll)
    out_ref[...] = jnp.zeros(out_ref.shape, jnp.float32) + total


def _ce_kernel(logits_ref, labels_ref, out_ref, *scratch,
               n_rows, n_cols, block_rows, block_cols,
               num_col_blocks, mask_cols, mask_rows):
    ri = pl.program_id(0)                          # row-block index (parallel)
    x = logits_ref[...].astype(jnp.float32)        # (bm, bc) upcast in-kernel
    lab = labels_ref[...]                          # (bm, 1) int32
    col_iota = lax.broadcasted_iota(jnp.int32, (block_rows, block_cols), 1)

    if num_col_blocks == 1:
        # ---- fast path: whole class axis in one tile; no online state ------
        m = jnp.max(x, axis=1, keepdims=True)
        lse = m + jnp.log(jnp.sum(jnp.exp(x - m), axis=1, keepdims=True))
        picked = jnp.sum(jnp.where(col_iota == lab, x, 0.0),
                         axis=1, keepdims=True)
        _store_block_nll_sum(out_ref, lse - picked, ri,
                             block_rows=block_rows, n_rows=n_rows,
                             mask_rows=mask_rows)
        return

    # ---- online-logsumexp path over the class (reduction) axis -------------
    m_ref, s_ref, p_ref = scratch
    cj = pl.program_id(1)
    nc = pl.num_programs(1)
    col_base = cj * block_cols

    @pl.when(cj == 0)
    def _():
        m_ref[...] = jnp.full(m_ref.shape, _NEG_BIG, jnp.float32)
        s_ref[...] = jnp.zeros(s_ref.shape, jnp.float32)
        p_ref[...] = jnp.zeros(p_ref.shape, jnp.float32)

    if mask_cols:  # static: only when C is not a multiple of block_cols
        # Compare iota against (n_cols - col_base): avoids a full-tile i32 add.
        x = jnp.where(col_iota < (n_cols - col_base), x, _NEG_BIG)

    m_prev = m_ref[...]
    m_new = jnp.maximum(m_prev, jnp.max(x, axis=1, keepdims=True))
    alpha = jnp.exp(m_prev - m_new)
    s_ref[...] = alpha * s_ref[...] + jnp.sum(jnp.exp(x - m_new),
                                              axis=1, keepdims=True)
    m_ref[...] = m_new

    # One-hot pick of the label logit (each label lands in exactly one class
    # block, so plain accumulation is exact).  Compare iota against
    # (lab - col_base) — a (bm,1) per-row shift, not a full-tile add.
    p_ref[...] += jnp.sum(jnp.where(col_iota == (lab - col_base), x, 0.0),
                          axis=1, keepdims=True)

    @pl.when(cj == nc - 1)
    def _():
        nll = (m_ref[...] + jnp.log(s_ref[...])) - p_ref[...]
        _store_block_nll_sum(out_ref, nll, ri,
                             block_rows=block_rows, n_rows=n_rows,
                             mask_rows=mask_rows)


def cross_entropy_loss(logits, labels):
    """Equivalent of F.nll_loss(F.log_softmax(logits, dim=1), labels) (mean)."""
    n_rows, n_cols = logits.shape

    # ---- class tiling -------------------------------------------------------
    if n_cols <= _FULL_C_MAX:
        block_cols = n_cols                 # single class block (fast path)
    else:
        block_cols = _WIDE_BLOCK_COLS       # multiple of 128
    num_col_blocks = _cdiv(n_cols, block_cols)
    mask_cols = (n_cols % block_cols) != 0

    # ---- row tiling: keep the streamed block and every full-tile f32
    # intermediate at ~4 MiB each ---------------------------------------------
    block_rows = max(_SUBLANE, min(_MAX_BLOCK_ROWS,
                                   _MAX_BLOCK_ELEMS // max(block_cols, 1)))
    block_rows = (block_rows // _SUBLANE) * _SUBLANE
    block_rows = min(block_rows,
                     max(_SUBLANE, _cdiv(n_rows, _SUBLANE) * _SUBLANE))
    num_row_blocks = _cdiv(n_rows, block_rows)
    mask_rows = (n_rows % block_rows) != 0

    kernel = functools.partial(
        _ce_kernel,
        n_rows=n_rows, n_cols=n_cols,
        block_rows=block_rows, block_cols=block_cols,
        num_col_blocks=num_col_blocks,
        mask_cols=mask_cols, mask_rows=mask_rows)

    labels2d = labels.astype(jnp.int32).reshape(n_rows, 1)

    scratch_shapes = (
        [] if num_col_blocks == 1
        else [pltpu.VMEM((block_rows, 1), jnp.float32)] * 3)  # m, s, picked

    # One lane-dense (8,128) partial-sum block per row block; each row block's
    # NLL sum is broadcast across its block and reduced in the wrapper.
    partials = pl.pallas_call(
        kernel,
        out_shape=jax.ShapeDtypeStruct(
            (num_row_blocks * _SUBLANE, _LANE), jnp.float32),
        grid_spec=pltpu.PrefetchScalarGridSpec(
            num_scalar_prefetch=0,
            grid=(num_row_blocks, num_col_blocks),
            in_specs=[
                # logits: (bm, bc) tile streamed in the input dtype
                pl.BlockSpec((block_rows, block_cols),
                             lambda ri, cj: (ri, cj)),
                # labels: tiny column, DMA'd once per ROW block (ignores cj)
                pl.BlockSpec((block_rows, 1),
                             lambda ri, cj: (ri, 0)),
            ],
            out_specs=pl.BlockSpec((_SUBLANE, _LANE),
                                   lambda ri, cj: (ri, 0)),
            scratch_shapes=scratch_shapes,
        ),
        compiler_params=pltpu.CompilerParams(
            # Row axis independent ("parallel" => megacore sharding on
            # multi-TC chips); class axis is the online reduction.
            dimension_semantics=("parallel", "arbitrary"),
            vmem_limit_bytes=_VMEM_LIMIT,
        ),
    )(logits, labels2d)

    loss_sum = jnp.sum(partials[0::_SUBLANE, 0])
    # Mean reduction over the batch (nll_loss default reduction='mean').
    return loss_sum / jnp.float32(n_rows)


if __name__ == "__main__":
    def ref_loss(lg, lb):
        lp = jax.nn.log_softmax(lg.astype(jnp.float32), axis=1)
        return -jnp.mean(jnp.take_along_axis(lp, lb[:, None], axis=1))

    key = jax.random.PRNGKey(0)
    k1, k2, k3, k4 = jax.random.split(key, 4)

    # Case 1: small vocab -> single class block (static fast path).
    n1, c1 = 16, 32
    logits1 = jax.random.normal(k1, (n1, c1), dtype=jnp.float32)
    labels1 = jax.random.randint(k2, (n1,), 0, c1, dtype=jnp.int32)
    loss1 = jax.block_until_ready(cross_entropy_loss(logits1, labels1))
    ref1 = ref_loss(logits1, labels1)
    assert jnp.allclose(loss1, ref1, rtol=1e-4, atol=1e-4), (loss1, ref1)

    # Case 2: ragged batch + big vocab -> multi-block online-logsumexp path
    # (exercises class masking, row masking and the scratch accumulators).
    n2, c2 = 13, 8200
    logits2 = jax.random.normal(k3, (n2, c2), dtype=jnp.float32)
    labels2 = jax.random.randint(k4, (n2,), 0, c2, dtype=jnp.int32)
    loss2 = jax.block_until_ready(cross_entropy_loss(logits2, labels2))
    ref2 = ref_loss(logits2, labels2)
    assert jnp.allclose(loss2, ref2, rtol=1e-4, atol=1e-4), (loss2, ref2)

    print("KERNEL_OK")
</pallas_src>

<mosaic_0001>
module attributes {stable_mosaic.version = 11 : i64} {
  func.func @_ce_kernel(%arg0: i32, %arg1: i32, %arg2: memref<16x32xf32, #tpu.memory_space<vmem>>, %arg3: memref<16x1xi32, #tpu.memory_space<vmem>>, %arg4: memref<8x128xf32, #tpu.memory_space<vmem>>) attributes {dimension_semantics = [#tpu.dimension_semantics<parallel>, #tpu.dimension_semantics<arbitrary>], iteration_bounds = array<i64: 1, 1>, scalar_prefetch = 0 : i64, scratch_operands = 0 : i64, tpu.core_type = #tpu.core_type<tc>, window_params = [{transform_indices = @transform_0, window_bounds = array<i64: 16, 32>}, {transform_indices = @transform_1, window_bounds = array<i64: 16, 1>}, {transform_indices = @transform_2, window_bounds = array<i64: 8, 128>}]} {
    %c0 = arith.constant 0 : index
    %c0_0 = arith.constant 0 : index
    %0 = vector.load %arg2[%c0, %c0_0] : memref<16x32xf32, #tpu.memory_space<vmem>>, vector<16x32xf32>
    %c0_1 = arith.constant 0 : index
    %c0_2 = arith.constant 0 : index
    %1 = vector.load %arg3[%c0_1, %c0_2] : memref<16x1xi32, #tpu.memory_space<vmem>>, vector<16x1xi32>
    %2 = tpu.iota {dimensions = array<i32: 1>} : vector<16x32xi32>
    %cst = arith.constant dense<0xFF800000> : vector<16xf32>
    %3 = vector.multi_reduction <maximumf>, %0, %cst [1] : vector<16x32xf32> to vector<16xf32>
    %4 = vector.shape_cast %3 : vector<16xf32> to vector<16x1xf32>
    %5 = vector.broadcast %4 : vector<16x1xf32> to vector<16x32xf32>
    %6 = arith.subf %0, %5 : vector<16x32xf32>
    %7 = math.exp %6 : vector<16x32xf32>
    %cst_3 = arith.constant dense<0.000000e+00> : vector<16xf32>
    %8 = vector.multi_reduction <add>, %7, %cst_3 [1] : vector<16x32xf32> to vector<16xf32>
    %9 = vector.shape_cast %8 : vector<16xf32> to vector<16x1xf32>
    %10 = math.log %9 : vector<16x1xf32>
    %11 = arith.addf %4, %10 : vector<16x1xf32>
    %12 = vector.broadcast %1 : vector<16x1xi32> to vector<16x32xi32>
    %13 = arith.cmpi eq, %2, %12 : vector<16x32xi32>
    %cst_4 = arith.constant 0.000000e+00 : f32
    %14 = vector.broadcast %cst_4 : f32 to vector<16x32xf32>
    %15 = arith.select %13, %0, %14 : vector<16x32xi1>, vector<16x32xf32>
    %cst_5 = arith.constant dense<0.000000e+00> : vector<16xf32>
    %16 = vector.multi_reduction <add>, %15, %cst_5 [1] : vector<16x32xf32> to vector<16xf32>
    %17 = vector.shape_cast %16 : vector<16xf32> to vector<16x1xf32>
    %18 = arith.subf %11, %17 : vector<16x1xf32>
    %19 = vector.shape_cast %18 : vector<16x1xf32> to vector<1x16x1xf32>
    %cst_6 = arith.constant dense<0.000000e+00> : vector<1xf32>
    %20 = vector.multi_reduction <add>, %19, %cst_6 [1, 2] : vector<1x16x1xf32> to vector<1xf32>
    %21 = vector.shape_cast %20 : vector<1xf32> to vector<1x1x1xf32>
    %22 = vector.extract %21[0, 0, 0] : f32 from vector<1x1x1xf32>
    %cst_7 = arith.constant 0.000000e+00 : f32
    %23 = vector.broadcast %cst_7 : f32 to vector<8x128xf32>
    %24 = vector.broadcast %22 : f32 to vector<8x128xf32>
    %25 = arith.addf %23, %24 : vector<8x128xf32>
    %c0_8 = arith.constant 0 : index
    %c0_9 = arith.constant 0 : index
    %26 = vector.load %arg4[%c0_8, %c0_9] : memref<8x128xf32, #tpu.memory_space<vmem>>, vector<8x128xf32>
    tpu.vector_store %arg4[%c0_8, %c0_9], %25 {strides = array<i32>} : memref<8x128xf32, #tpu.memory_space<vmem>>, vector<8x128xf32>,
    return
  }
  func.func @transform_0(%arg0: i32, %arg1: i32) -> (i32, i32) {
    %c0_i32 = arith.constant 0 : i32
    return %arg0, %arg1 : i32, i32
  }
  func.func @transform_1(%arg0: i32, %arg1: i32) -> (i32, i32) {
    %c0_i32 = arith.constant 0 : i32
    %c0_i32_0 = arith.constant 0 : i32
    return %arg0, %c0_i32 : i32, i32
  }
  func.func @transform_2(%arg0: i32, %arg1: i32) -> (i32, i32) {
    %c0_i32 = arith.constant 0 : i32
    %c0_i32_0 = arith.constant 0 : i32
    return %arg0, %c0_i32 : i32, i32
  }
}

</mosaic_0001>

<llo_original>
// kernel: tpu_custom_call.1
$region0: #{tpu_custom_call.1}
  #allocation0 [shape = 'u32[]', space=smem, size = 0x4, offset = 0x4, fixed_abs, tag = 'smem constant byte address 0x4 - core index']
  #allocation1 [shape = 'u32[144,128]{1,0:T(1,128)}', space=vmem, size = 0x12000, scoped, tag = 'internal scratch']
  %s0 = inlined_call_operand.vmem [shape: f32[16,32], index: 0, kind: input, shape index: {}]
  %s1 = inlined_call_operand.vmem [shape: s32[16,1], index: 1, kind: input, shape index: {}]
  %s2 = inlined_call_operand.hbm [shape: f32[8,128], index: 2, kind: output, shape index: {}]
  %s3 = sld [smem:[#allocation0]]
  $region18: #{tpu_custom_call.1} parent=0
    _
  %s5 = ssub.s32 1, %s3
  %s6 = scalar_select 0, %s5, %s3
  $region1: #{tpu_custom_call.1} parent=0
    #allocation2 [shape = 'u8[4096]{0}', space=vmem, size = 0x1000, scoped, tag = 'output window, operand 0, single buffered']
    #allocation3 [shape = 's32[1]{0}', space=sflag, size = 0x4, scoped, tag = 'scoped memory for tpu_custom_call.1']
    %7 = vsyncpa [#allocation3], 0
    // Predicated region
    $region2: #{tpu_custom_call.1} parent=1 // pred_check
      _
    $region3: #{tpu_custom_call.1} parent=1 // pred_check_branch
      %9 = sbr.rel (0) target = $region5
    $region4: #{tpu_custom_call.1} parent=1 // pred_region
      _
    $region5: #{tpu_custom_call.1} parent=1 // pred_fallthru
      _
    // Predicated region
    $region6: #{tpu_custom_call.1} parent=1 // pred_check
      _
    $region7: #{tpu_custom_call.1} parent=1 // pred_check_branch
      %11 = sbr.rel (0) target = $region9
    $region8: #{tpu_custom_call.1} parent=1 // pred_region
      _
    $region9: #{tpu_custom_call.1} parent=1 // pred_fallthru
      _
    %v12 = vld [vmem:[%s0] sm:$0xff]
    %v13 = vld [vmem:[%s0 + $0x8] sm:$0xff]
    %v14 = vld [vmem:[%s1] sm:$0xff]
    %v15 = vld [vmem:[%s1 + $0x8] sm:$0xff]
    %v16 = vlaneseq
    %v17 = vand.u32 %v16, 127
    %vm18 = vcmask 261120
    %v19 = vsel %vm18, %v12, -inf
    %20 = vmax.xlane.f32.xlu0 %v19
    %v21 = vpop.xlane.xlu0 %20
    %v22 = vsel %vm18, %v13, -inf
    %23 = vmax.xlane.f32.xlu0 %v22
    %v24 = vpop.xlane.xlu0 %23
    %v25 = vsub.f32 %v12, %v21
    %v26 = vsub.f32 %v13, %v24
    %v27 = vmul.f32 %v25, 1.442695
    %v28 = vpow.pop %v27
    %v29 = vmul.f32 %v26, 1.442695
    %v30 = vpow.pop %v29
    %v31 = vsel %vm18, %v28, 0.0
    %32 = vadd.xlane.f32.xlu0 %v31
    %v33 = vpop.xlane.xlu0 %32
    %v34 = vsel %vm18, %v30, 0.0
    %35 = vadd.xlane.f32.xlu0 %v34
    %v36 = vpop.xlane.xlu0 %35
    %v37 = vlog2.pop %v33
    %v38 = vmul.f32 %v37, 0.6931472
    %v39 = vlog2.pop %v36
    %v40 = vmul.f32 %v39, 0.6931472
    %v41 = vadd.f32 %v21, %v38
    %v42 = vadd.f32 %v24, %v40
    %43 = vset.pattern.permute.xlu0 0
    %44 = vperm.xlu0 %43, %v14
    %v45 = vpop.permute.xlu0 %44
    %46 = vset.pattern.permute.xlu0 0
    %47 = vperm.xlu0 %46, %v15
    %v48 = vpop.permute.xlu0 %47
    %vm49 = vcmp.eq.s32.totalorder %v17, %v45
    %vm50 = vcmp.eq.s32.totalorder %v17, %v48
    %v51 = vsel %vm49, %v12, 0.0
    %v52 = vsel %vm50, %v13, 0.0
    %v53 = vsel %vm18, %v51, 0.0
    %54 = vadd.xlane.f32.xlu0 %v53
    %v55 = vpop.xlane.xlu0 %54
    %v56 = vsel %vm18, %v52, 0.0
    %57 = vadd.xlane.f32.xlu0 %v56
    %v58 = vpop.xlane.xlu0 %57
    %v59 = vsub.f32 %v41, %v55
    %v60 = vsub.f32 %v42, %v58
    %vm61 = vcmask 7168
    %v62 = vsel %vm61, %v59, 0.0
    %v63 = vsel %vm61, %v60, 0.0
    %v64 = vadd.f32 %v62, %v63
    %65 = vadd.xlane.f32.xlu0 %v64
    %v66 = vpop.xlane.xlu0 %65
    %v67 = vrot.slane %v66, 4
    %v68 = vadd.f32 %v66, %v67
    %v69 = vrot.slane %v68, 2
    %v70 = vadd.f32 %v68, %v69
    %v71 = vrot.slane %v70, 1
    %v72 = vadd.f32 %v70, %v71
    %s73 = vtos %v72
    %v74 = vstv %s73
    %v75 = vadd.f32 %v74, 0.0
    %76 = vst [vmem:[#allocation2] sm:$0xff] %v75
    // Predicated region
    $region10: #{tpu_custom_call.1} parent=1 // pred_check
      _
    $region11: #{tpu_custom_call.1} parent=1 // pred_check_branch
      %78 = sbr.rel (0) target = $region13
    $region12: #{tpu_custom_call.1} parent=1 // pred_region
      %s80 = ssub.s32 128, 128
      %81 = vsyncadd [#allocation3], %s80
      %s83 = sshll.u32 [#allocation2], 4
      %s84 = int_to_ptr.vmem [resolvable:$true] %s83
      %86 = dma.vmem_to_hbm [thread:$0]  %s84, 128, %s2, [#allocation3]
    $region13: #{tpu_custom_call.1} parent=1 // pred_fallthru
      _
    // Predicated region
    $region14: #{tpu_custom_call.1} parent=1 // pred_check
      _
    $region15: #{tpu_custom_call.1} parent=1 // pred_check_branch
      %88 = sbr.rel (0) target = $region17
    $region16: #{tpu_custom_call.1} parent=1 // pred_region
      %89 = dma.done [#allocation3], 128
    $region17: #{tpu_custom_call.1} parent=1 // pred_fallthru
      _
    %90 = vsyncpa [#allocation3], 1

</llo_original>
